<compile_context>
chip_gen: v6e
topology: v6e:2x2x1
jax: 0.10.0
libtpu: 0.0.40
codegen_flags: <defaults>
</compile_context>

<pallas_src>
import functools

import jax
import jax.numpy as jnp
from jax.experimental import pallas as pl
from jax.experimental.pallas import tpu as pltpu

LANE = 128
SUBLANE = 8


def _round_up(x, m):
    return ((x + m - 1) // m) * m


def _user_encoder_kernel(x_ref, wp_ref, bp_ref, wa_ref, ba_ref, q_ref, o_ref,
                         *, tb, hist):
    # x_ref : (tb*hist, EMB_P) pooled token embeddings for this batch tile.
    x = x_ref[...]

    # News-encoder dense head (Linear + ReLU): one big MXU matmul, M = tb*hist.
    h = jnp.dot(x, wp_ref[...], preferred_element_type=jnp.float32)       # (M, D_P)
    h = jnp.maximum(h + bp_ref[...], 0.0)

    # Additive-attention projection: tanh(h W_a + b_a).
    a = jnp.tanh(
        jnp.dot(h, wa_ref[...], preferred_element_type=jnp.float32) + ba_ref[...]
    )                                                                      # (M, Q_P)

    # Score "matvec" on the VPU/XLU (multiply + lane reduce) instead of a
    # degenerate N=1 MXU pass: scores[m] = sum_q a[m, q] * query[q].
    scores = jnp.sum(a * q_ref[...], axis=-1, keepdims=True)              # (M, 1)
    scores = scores.reshape(tb, hist, 1)

    # Per-example softmax over the full HIST axis (never tiled across grid).
    m_max = jnp.max(scores, axis=1, keepdims=True)                        # (tb, 1, 1)
    e = jnp.exp(scores - m_max)                                           # (tb, hist, 1)
    denom = jnp.sum(e, axis=1, keepdims=True)                             # (tb, 1, 1)
    alpha = e * pl.reciprocal(denom, approx=True)                         # (tb, hist, 1)

    # weighted = h * alpha ; output = sum over history -> (tb, D_P).
    # NOTE: hist=8 keeps this reshape tile-aligned (8-sublane groups), so it is
    # a cheap relayout; for non-multiple-of-8 HIST it may materialise a copy.
    h3 = h.reshape(tb, hist, h.shape[-1])
    o_ref[...] = jnp.sum(h3 * alpha, axis=1)


def user_encoder(x_pool, w_proj, b_proj, w_att, b_att, query, *, tb=None):
    B, HIST, EMB = x_pool.shape
    D = w_proj.shape[1]
    Q = w_att.shape[1]

    EMB_P = _round_up(EMB, LANE)
    D_P = _round_up(D, LANE)
    Q_P = _round_up(Q, LANE)

    if tb is None:
        # Target M = tb*HIST ~ 256; tb must be a multiple of 8 so the (tb, D_P)
        # output block satisfies the (8, 128) tiling rule.
        tb = _round_up(max(1, -(-256 // HIST)), SUBLANE)
        b_pad8 = _round_up(B, SUBLANE)
        tb = min(tb, b_pad8)
        # Prefer >= 2 grid steps when the batch allows (v7x megacore sharding).
        if tb >= b_pad8 and b_pad8 >= 2 * SUBLANE:
            tb = max(SUBLANE, (b_pad8 // 2) // SUBLANE * SUBLANE)

    B_pad = _round_up(B, tb)
    n_steps = B_pad // tb

    f32 = jnp.float32
    # Zero-pad every feature dim to lane width 128 and the batch up to a tile
    # multiple.  Zero-padded weight rows/cols leave the real outputs unchanged;
    # padded output columns / batch rows are sliced off below.
    x_flat = jnp.zeros((B_pad * HIST, EMB_P), f32)
    x_flat = x_flat.at[: B * HIST, :EMB].set(
        x_pool.reshape(B * HIST, EMB).astype(f32)
    )
    wp = jnp.zeros((EMB_P, D_P), f32).at[:EMB, :D].set(w_proj.astype(f32))
    bp = jnp.zeros((1, D_P), f32).at[0, :D].set(b_proj.astype(f32))
    wa = jnp.zeros((D_P, Q_P), f32).at[:D, :Q].set(w_att.astype(f32))
    ba = jnp.zeros((1, Q_P), f32).at[0, :Q].set(b_att.astype(f32))
    q_row = jnp.zeros((1, Q_P), f32).at[0, :Q].set(query.astype(f32))

    kernel = functools.partial(_user_encoder_kernel, tb=tb, hist=HIST)

    out = pl.pallas_call(
        kernel,
        out_shape=jax.ShapeDtypeStruct((B_pad, D_P), f32),
        grid_spec=pltpu.PrefetchScalarGridSpec(
            num_scalar_prefetch=0,
            grid=(n_steps,),
            in_specs=[
                # x tile: the only HBM stream that scales with B.
                pl.BlockSpec((tb * HIST, EMB_P), lambda b: (b, 0)),
                # Weights: constant index maps -> fetched once, stay resident.
                pl.BlockSpec((EMB_P, D_P), lambda b: (0, 0)),
                pl.BlockSpec((1, D_P), lambda b: (0, 0)),
                pl.BlockSpec((D_P, Q_P), lambda b: (0, 0)),
                pl.BlockSpec((1, Q_P), lambda b: (0, 0)),
                pl.BlockSpec((1, Q_P), lambda b: (0, 0)),
            ],
            out_specs=pl.BlockSpec((tb, D_P), lambda b: (b, 0)),
        ),
        compiler_params=pltpu.CompilerParams(
            dimension_semantics=("parallel",),
        ),
    )(x_flat, wp, bp, wa, ba, q_row)

    return out[:B, :D]


def _reference(x_pool, w_proj, b_proj, w_att, b_att, query):
    h = jnp.maximum(jnp.einsum("bhe,ed->bhd", x_pool, w_proj) + b_proj, 0.0)
    a = jnp.tanh(jnp.einsum("bhd,dq->bhq", h, w_att) + b_att)
    scores = jnp.einsum("bhq,q->bh", a, query)
    alpha = jax.nn.softmax(scores, axis=1)
    return jnp.sum(h * alpha[..., None], axis=1)


if __name__ == "__main__":
    # Small shapes consistent with the module's forward.
    B, HIST, SEQ = 16, 8, 12
    VOCAB, EMB = 50, 32
    CONV_KERNEL_NUM = 64   # D (conv_kernel_num)
    QUERY_DIM = 32         # query_dim (module default 200; kept small here)

    key = jax.random.PRNGKey(0)
    k_tok, k_emb, k_wp, k_bp, k_wa, k_ba, k_q = jax.random.split(key, 7)

    news_histories = jax.random.randint(
        k_tok, (B, HIST, SEQ), minval=0, maxval=VOCAB, dtype=jnp.int32
    )

    # Deterministic synthetic parameters.
    emb_table = jax.random.normal(k_emb, (VOCAB, EMB), dtype=jnp.float32) * 0.1
    w_proj = jax.random.normal(k_wp, (EMB, CONV_KERNEL_NUM), dtype=jnp.float32) * 0.1
    b_proj = jax.random.normal(k_bp, (CONV_KERNEL_NUM,), dtype=jnp.float32) * 0.01
    w_att = jax.random.normal(k_wa, (CONV_KERNEL_NUM, QUERY_DIM), dtype=jnp.float32) * 0.1
    b_att = jax.random.normal(k_ba, (QUERY_DIM,), dtype=jnp.float32) * 0.01
    query = jax.random.normal(k_q, (QUERY_DIM,), dtype=jnp.float32) * 0.1

    # Glue part of the injected news_encoder: embedding lookup + mean pool over
    # SEQ.  (Token-id gather stays in plain JAX; the dense ReLU head is fused
    # into the Pallas kernel.)
    flat = news_histories.reshape(B * HIST, SEQ)              # view(B*H, SEQ)
    tok_emb = emb_table[flat]                                  # (B*H, SEQ, EMB)
    x_pool = jnp.mean(tok_emb, axis=1).reshape(B, HIST, EMB)   # (B, HIST, EMB)

    out = user_encoder(x_pool, w_proj, b_proj, w_att, b_att, query)
    out = jax.block_until_ready(out)

    ref = _reference(x_pool, w_proj, b_proj, w_att, b_att, query)
    assert out.shape == (B, CONV_KERNEL_NUM)
    assert jnp.allclose(out, ref, atol=1e-3, rtol=1e-3), "mismatch vs reference"

    print("KERNEL_OK")
</pallas_src>

<mosaic_0001>
module attributes {stable_mosaic.version = 11 : i64} {
  func.func @_user_encoder_kernel(%arg0: i32, %arg1: memref<64x128xf32, #tpu.memory_space<vmem>>, %arg2: memref<128x128xf32, #tpu.memory_space<vmem>>, %arg3: memref<1x128xf32, #tpu.memory_space<vmem>>, %arg4: memref<128x128xf32, #tpu.memory_space<vmem>>, %arg5: memref<1x128xf32, #tpu.memory_space<vmem>>, %arg6: memref<1x128xf32, #tpu.memory_space<vmem>>, %arg7: memref<8x128xf32, #tpu.memory_space<vmem>>) attributes {dimension_semantics = [#tpu.dimension_semantics<parallel>], iteration_bounds = array<i64: 2>, scalar_prefetch = 0 : i64, scratch_operands = 0 : i64, tpu.core_type = #tpu.core_type<tc>, window_params = [{transform_indices = @transform_0, window_bounds = array<i64: 64, 128>}, {pipeline_mode = #tpu.pipeline_mode<synchronous>, transform_indices = @transform_1, window_bounds = array<i64: 128, 128>}, {pipeline_mode = #tpu.pipeline_mode<synchronous>, transform_indices = @transform_2, window_bounds = array<i64: 1, 128>}, {pipeline_mode = #tpu.pipeline_mode<synchronous>, transform_indices = @transform_3, window_bounds = array<i64: 128, 128>}, {pipeline_mode = #tpu.pipeline_mode<synchronous>, transform_indices = @transform_4, window_bounds = array<i64: 1, 128>}, {pipeline_mode = #tpu.pipeline_mode<synchronous>, transform_indices = @transform_5, window_bounds = array<i64: 1, 128>}, {transform_indices = @transform_6, window_bounds = array<i64: 8, 128>}]} {
    %c0 = arith.constant 0 : index
    %c0_0 = arith.constant 0 : index
    %0 = vector.load %arg1[%c0, %c0_0] : memref<64x128xf32, #tpu.memory_space<vmem>>, vector<64x128xf32>
    %c0_1 = arith.constant 0 : index
    %c0_2 = arith.constant 0 : index
    %1 = vector.load %arg2[%c0_1, %c0_2] : memref<128x128xf32, #tpu.memory_space<vmem>>, vector<128x128xf32>
    %cst = arith.constant dense<0.000000e+00> : vector<64x128xf32>
    %2 = tpu.matmul %0, %1, %cst {dimension_numbers = #tpu.dot_dimension_numbers<[1], [0], [0], [1], [0, 0, 1, 1], [], []>} : vector<64x128xf32>, vector<128x128xf32>, vector<64x128xf32> -> vector<64x128xf32>
    %c0_3 = arith.constant 0 : index
    %c0_4 = arith.constant 0 : index
    %3 = vector.load %arg3[%c0_3, %c0_4] : memref<1x128xf32, #tpu.memory_space<vmem>>, vector<1x128xf32>
    %4 = vector.broadcast %3 : vector<1x128xf32> to vector<64x128xf32>
    %5 = arith.addf %2, %4 : vector<64x128xf32>
    %cst_5 = arith.constant 0.000000e+00 : f32
    %6 = vector.broadcast %cst_5 : f32 to vector<64x128xf32>
    %7 = arith.maximumf %5, %6 : vector<64x128xf32>
    %c0_6 = arith.constant 0 : index
    %c0_7 = arith.constant 0 : index
    %8 = vector.load %arg4[%c0_6, %c0_7] : memref<128x128xf32, #tpu.memory_space<vmem>>, vector<128x128xf32>
    %cst_8 = arith.constant dense<0.000000e+00> : vector<64x128xf32>
    %9 = tpu.matmul %7, %8, %cst_8 {dimension_numbers = #tpu.dot_dimension_numbers<[1], [0], [0], [1], [0, 0, 1, 1], [], []>} : vector<64x128xf32>, vector<128x128xf32>, vector<64x128xf32> -> vector<64x128xf32>
    %c0_9 = arith.constant 0 : index
    %c0_10 = arith.constant 0 : index
    %10 = vector.load %arg5[%c0_9, %c0_10] : memref<1x128xf32, #tpu.memory_space<vmem>>, vector<1x128xf32>
    %11 = vector.broadcast %10 : vector<1x128xf32> to vector<64x128xf32>
    %12 = arith.addf %9, %11 : vector<64x128xf32>
    %13 = math.tanh %12 : vector<64x128xf32>
    %c0_11 = arith.constant 0 : index
    %c0_12 = arith.constant 0 : index
    %14 = vector.load %arg6[%c0_11, %c0_12] : memref<1x128xf32, #tpu.memory_space<vmem>>, vector<1x128xf32>
    %15 = vector.broadcast %14 : vector<1x128xf32> to vector<64x128xf32>
    %16 = arith.mulf %13, %15 : vector<64x128xf32>
    %cst_13 = arith.constant dense<0.000000e+00> : vector<64xf32>
    %17 = vector.multi_reduction <add>, %16, %cst_13 [1] : vector<64x128xf32> to vector<64xf32>
    %18 = vector.shape_cast %17 : vector<64xf32> to vector<64x1xf32>
    %19 = vector.shape_cast %18 : vector<64x1xf32> to vector<8x8x1xf32>
    %cst_14 = arith.constant dense<0xFF800000> : vector<8x1xf32>
    %20 = vector.multi_reduction <maximumf>, %19, %cst_14 [1] : vector<8x8x1xf32> to vector<8x1xf32>
    %21 = vector.shape_cast %20 : vector<8x1xf32> to vector<8x1x1xf32>
    %22 = vector.broadcast %21 : vector<8x1x1xf32> to vector<8x8x1xf32>
    %23 = arith.subf %19, %22 : vector<8x8x1xf32>
    %24 = math.exp %23 : vector<8x8x1xf32>
    %cst_15 = arith.constant dense<0.000000e+00> : vector<8x1xf32>
    %25 = vector.multi_reduction <add>, %24, %cst_15 [1] : vector<8x8x1xf32> to vector<8x1xf32>
    %26 = vector.shape_cast %25 : vector<8x1xf32> to vector<8x1x1xf32>
    %27 = tpu.reciprocal %26 {approx = true} : vector<8x1x1xf32> -> vector<8x1x1xf32>
    %28 = vector.broadcast %27 : vector<8x1x1xf32> to vector<8x8x1xf32>
    %29 = arith.mulf %24, %28 : vector<8x8x1xf32>
    %30 = vector.shape_cast %7 : vector<64x128xf32> to vector<8x8x128xf32>
    %31 = vector.broadcast %29 : vector<8x8x1xf32> to vector<8x8x128xf32>
    %32 = arith.mulf %30, %31 : vector<8x8x128xf32>
    %cst_16 = arith.constant dense<0.000000e+00> : vector<8x128xf32>
    %33 = vector.multi_reduction <add>, %32, %cst_16 [1] : vector<8x8x128xf32> to vector<8x128xf32>
    %c0_17 = arith.constant 0 : index
    %c0_18 = arith.constant 0 : index
    %34 = vector.load %arg7[%c0_17, %c0_18] : memref<8x128xf32, #tpu.memory_space<vmem>>, vector<8x128xf32>
    tpu.vector_store %arg7[%c0_17, %c0_18], %33 {strides = array<i32>} : memref<8x128xf32, #tpu.memory_space<vmem>>, vector<8x128xf32>,
    return
  }
  func.func @transform_0(%arg0: i32) -> (i32, i32) {
    %c0_i32 = arith.constant 0 : i32
    %c0_i32_0 = arith.constant 0 : i32
    return %arg0, %c0_i32 : i32, i32
  }
  func.func @transform_1(%arg0: i32) -> (i32, i32) {
    %c0_i32 = arith.constant 0 : i32
    %c0_i32_0 = arith.constant 0 : i32
    %c0_i32_1 = arith.constant 0 : i32
    return %c0_i32, %c0_i32_0 : i32, i32
  }
  func.func @transform_2(%arg0: i32) -> (i32, i32) {
    %c0_i32 = arith.constant 0 : i32
    %c0_i32_0 = arith.constant 0 : i32
    %c0_i32_1 = arith.constant 0 : i32
    return %c0_i32, %c0_i32_0 : i32, i32
  }
  func.func @transform_3(%arg0: i32) -> (i32, i32) {
    %c0_i32 = arith.constant 0 : i32
    %c0_i32_0 = arith.constant 0 : i32
    %c0_i32_1 = arith.constant 0 : i32
    return %c0_i32, %c0_i32_0 : i32, i32
  }
  func.func @transform_4(%arg0: i32) -> (i32, i32) {
    %c0_i32 = arith.constant 0 : i32
    %c0_i32_0 = arith.constant 0 : i32
    %c0_i32_1 = arith.constant 0 : i32
    return %c0_i32, %c0_i32_0 : i32, i32
  }
  func.func @transform_5(%arg0: i32) -> (i32, i32) {
    %c0_i32 = arith.constant 0 : i32
    %c0_i32_0 = arith.constant 0 : i32
    %c0_i32_1 = arith.constant 0 : i32
    return %c0_i32, %c0_i32_0 : i32, i32
  }
  func.func @transform_6(%arg0: i32) -> (i32, i32) {
    %c0_i32 = arith.constant 0 : i32
    %c0_i32_0 = arith.constant 0 : i32
    return %arg0, %c0_i32 : i32, i32
  }
}

</mosaic_0001>

<llo_original>
// kernel: tpu_custom_call.1
$region0: #{tpu_custom_call.1}
  #allocation0 [shape = 'u32[]', space=smem, size = 0x4, offset = 0x4, fixed_abs, tag = 'smem constant byte address 0x4 - core index']
  #allocation1 [shape = 'u32[144,128]{1,0:T(1,128)}', space=vmem, size = 0x12000, scoped, tag = 'internal scratch']
  %s0 = inlined_call_operand.hbm [shape: f32[128,128], index: 0, kind: input, shape index: {}]
  %s1 = inlined_call_operand.hbm [shape: f32[128,128], index: 1, kind: input, shape index: {}]
  %s2 = inlined_call_operand.vmem [shape: f32[1,128], index: 2, kind: input, shape index: {}]
  %s3 = inlined_call_operand.hbm [shape: f32[128,128], index: 3, kind: input, shape index: {}]
  %s4 = inlined_call_operand.vmem [shape: f32[1,128], index: 4, kind: input, shape index: {}]
  %s5 = inlined_call_operand.vmem [shape: f32[1,128], index: 5, kind: input, shape index: {}]
  %s6 = inlined_call_operand.hbm [shape: f32[16,128], index: 6, kind: output, shape index: {}]
  %s7 = sld [smem:[#allocation0]]
  $region69: #{tpu_custom_call.1} parent=0
    _
  %s9 = ssub.s32 1, %s7
  %s10 = scalar_select 0, %s9, %s7
  $region1: #{tpu_custom_call.1} parent=0
    #allocation2 [shape = 'u8[65536]{0}', space=vmem, size = 0x10000, scoped, tag = 'input window, operand 0']
    #allocation3 [shape = 's32[2]{0}', space=sflag, size = 0x8, scoped, tag = 'scoped memory for tpu_custom_call.1']
    #allocation4 [shape = 's32[2]{0}', space=sflag, size = 0x8, scoped, tag = 'scoped memory for tpu_custom_call.1']
    #allocation5 [shape = 'u8[65536]{0}', space=vmem, size = 0x10000, scoped, tag = 'input window, operand 1, single buffered']
    #allocation6 [shape = 's32[1]{0}', space=sflag, size = 0x4, scoped, tag = 'scoped memory for tpu_custom_call.1']
    #allocation7 [shape = 'u8[65536]{0}', space=vmem, size = 0x10000, scoped, tag = 'input window, operand 3, single buffered']
    #allocation8 [shape = 'u8[8192]{0}', space=vmem, size = 0x2000, scoped, tag = 'output window, operand 0']
    %11 = vsyncpa [#allocation3], 0
    %s12 = scalar_lea.sflag [#allocation3], 1
    %13 = vsyncpa %s12, 0
    %14 = vsyncpa [#allocation6], 0
    %15 = vsyncpa [#allocation4], 0
    %s16 = scalar_lea.sflag [#allocation4], 1
    %17 = vsyncpa %s16, 0
    loop: start=0, step=1, limit=4
    $region2: #{tpu_custom_call.1} parent=1 // loop_pre_header
      _
    $region3: #{tpu_custom_call.1} parent=1 // loop_header
      %s19 = sphi 0, %s23
      %p20 = scmp.ge.s32.totalorder %s19, 4
      %s29 = sphi 0, %s31
      %s32 = sphi 0, %s29
      %s33 = sphi 0, %s32
      %s49 = sphi 0, %s33
      %s53 = sphi 0, %s53
      %s55 = sphi 0, %s53
      %s56 = sphi 0, %s55
      %s70 = sphi 0, %s56
      %s74 = sphi 0, %s74
      %s76 = sphi 0, %s74
      %s77 = sphi 0, %s76
      %s91 = sphi 0, %s77
      %s95 = sphi 0, %s95
      %s97 = sphi 0, %s95
      %s98 = sphi 0, %s97
      %s112 = sphi 0, %s98
      %s116 = sphi 0, %s116
      %s118 = sphi 0, %s116
      %s119 = sphi 0, %s118
      %s133 = sphi 0, %s119
      %s137 = sphi 0, %s137
      %s139 = sphi 0, %s137
      %s140 = sphi 0, %s139
      %s154 = sphi 0, %s140
      %s160 = sphi 0, %s162
      %s163 = sphi 0, %s160
      %s164 = sphi 0, %s163
      %s180 = sphi 0, %s164
    $region4: #{tpu_custom_call.1} parent=1 // loop_header_branch
      %22 = sbr.rel (%p20) target = $region8
    $region5: #{tpu_custom_call.1} parent=1 // loop_body
      %s24 = ssub.s32 %s19, 1
      %s25 = ssub.s32 %s19, 2
      %s26 = sadd.s32 %s19, 1
      %s27 = ssub.s32 %s19, %s26
      %p28 = scmp.eq.s32.totalorder %s27, 0
      %s30 = sadd.s32 %s29, 1
      %s31 = scalar_select %p28, %s29, %s30
      %p34 = pneg %p28
      %p35 = scmp.eq.s32.totalorder %s19, 1
      %p36 = por %p34, %p35
      %p37 = scmp.ne.s32.totalorder %s29, %s32
      %p38 = scmp.eq.s32.totalorder %s19, 0
      %p39 = por %p37, %p38
      %p40 = scmp.ne.s32.totalorder %s29, %s32
      %p41 = scmp.eq.s32.totalorder %s24, 1
      %p42 = por %p40, %p41
      %p43 = scmp.ne.s32.totalorder %s32, %s33
      %p44 = scmp.eq.s32.totalorder %s24, 0
      %p45 = por %p43, %p44
      %p46 = scmp.ne.s32.totalorder %s32, %s33
      %p47 = scmp.eq.s32.totalorder %s25, 1
      %p48 = por %p46, %p47
      %p50 = scmp.ne.s32.totalorder %s33, %s49
      %p51 = scmp.eq.s32.totalorder %s25, 0
      %p52 = por %p50, %p51
      %s54 = sadd.s32 %s53, 1
      %p57 = scmp.eq.s32.totalorder %s19, 1
      %p58 = scmp.ne.s32.totalorder %s53, %s55
      %p59 = scmp.eq.s32.totalorder %s19, 0
      %p60 = por %p58, %p59
      %p61 = scmp.ne.s32.totalorder %s53, %s55
      %p62 = scmp.eq.s32.totalorder %s24, 1
      %p63 = por %p61, %p62
      %p64 = scmp.ne.s32.totalorder %s55, %s56
      %p65 = scmp.eq.s32.totalorder %s24, 0
      %p66 = por %p64, %p65
      %p67 = scmp.ne.s32.totalorder %s55, %s56
      %p68 = scmp.eq.s32.totalorder %s25, 1
      %p69 = por %p67, %p68
      %p71 = scmp.ne.s32.totalorder %s56, %s70
      %p72 = scmp.eq.s32.totalorder %s25, 0
      %p73 = por %p71, %p72
      %s75 = sadd.s32 %s74, 1
      %p78 = scmp.eq.s32.totalorder %s19, 1
      %p79 = scmp.ne.s32.totalorder %s74, %s76
      %p80 = scmp.eq.s32.totalorder %s19, 0
      %p81 = por %p79, %p80
      %p82 = scmp.ne.s32.totalorder %s74, %s76
      %p83 = scmp.eq.s32.totalorder %s24, 1
      %p84 = por %p82, %p83
      %p85 = scmp.ne.s32.totalorder %s76, %s77
      %p86 = scmp.eq.s32.totalorder %s24, 0
      %p87 = por %p85, %p86
      %p88 = scmp.ne.s32.totalorder %s76, %s77
      %p89 = scmp.eq.s32.totalorder %s25, 1
      %p90 = por %p88, %p89
      %p92 = scmp.ne.s32.totalorder %s77, %s91
      %p93 = scmp.eq.s32.totalorder %s25, 0
      %p94 = por %p92, %p93
      %s96 = sadd.s32 %s95, 1
      %p99 = scmp.eq.s32.totalorder %s19, 1
      %p100 = scmp.ne.s32.totalorder %s95, %s97
      %p101 = scmp.eq.s32.totalorder %s19, 0
      %p102 = por %p100, %p101
      %p103 = scmp.ne.s32.totalorder %s95, %s97
      %p104 = scmp.eq.s32.totalorder %s24, 1
      %p105 = por %p103, %p104
      %p106 = scmp.ne.s32.totalorder %s97, %s98
      %p107 = scmp.eq.s32.totalorder %s24, 0
      %p108 = por %p106, %p107
      %p109 = scmp.ne.s32.totalorder %s97, %s98
      %p110 = scmp.eq.s32.totalorder %s25, 1
      %p111 = por %p109, %p110
      %p113 = scmp.ne.s32.totalorder %s98, %s112
      %p114 = scmp.eq.s32.totalorder %s25, 0
      %p115 = por %p113, %p114
      %s117 = sadd.s32 %s116, 1
      %p120 = scmp.eq.s32.totalorder %s19, 1
      %p121 = scmp.ne.s32.totalorder %s116, %s118
      %p122 = scmp.eq.s32.totalorder %s19, 0
      %p123 = por %p121, %p122
      %p124 = scmp.ne.s32.totalorder %s116, %s118
      %p125 = scmp.eq.s32.totalorder %s24, 1
      %p126 = por %p124, %p125
      %p127 = scmp.ne.s32.totalorder %s118, %s119
      %p128 = scmp.eq.s32.totalorder %s24, 0
      %p129 = por %p127, %p128
      %p130 = scmp.ne.s32.totalorder %s118, %s119
      %p131 = scmp.eq.s32.totalorder %s25, 1
      %p132 = por %p130, %p131
      %p134 = scmp.ne.s32.totalorder %s119, %s133
      %p135 = scmp.eq.s32.totalorder %s25, 0
      %p136 = por %p134, %p135
      %s138 = sadd.s32 %s137, 1
      %p141 = scmp.eq.s32.totalorder %s19, 1
      %p142 = scmp.ne.s32.totalorder %s137, %s139
      %p143 = scmp.eq.s32.totalorder %s19, 0
      %p144 = por %p142, %p143
      %p145 = scmp.ne.s32.totalorder %s137, %s139
      %p146 = scmp.eq.s32.totalorder %s24, 1
      %p147 = por %p145, %p146
      %p148 = scmp.ne.s32.totalorder %s139, %s140
      %p149 = scmp.eq.s32.totalorder %s24, 0
      %p150 = por %p148, %p149
      %p151 = scmp.ne.s32.totalorder %s139, %s140
      %p152 = scmp.eq.s32.totalorder %s25, 1
      %p153 = por %p151, %p152
      %p155 = scmp.ne.s32.totalorder %s140, %s154
      %p156 = scmp.eq.s32.totalorder %s25, 0
      %p157 = por %p155, %p156
      %s158 = ssub.s32 %s19, %s26
      %p159 = scmp.eq.s32.totalorder %s158, 0
      %s161 = sadd.s32 %s160, 1
      %s162 = scalar_select %p159, %s160, %s161
      %p165 = pneg %p159
      %p166 = scmp.eq.s32.totalorder %s19, 1
      %p167 = por %p165, %p166
      %p168 = scmp.ne.s32.totalorder %s160, %s163
      %p169 = scmp.eq.s32.totalorder %s19, 0
      %p170 = por %p168, %p169
      %p171 = scmp.ne.s32.totalorder %s160, %s163
      %p172 = scmp.eq.s32.totalorder %s24, 1
      %p173 = por %p171, %p172
      %p174 = scmp.ne.s32.totalorder %s163, %s164
      %p175 = scmp.eq.s32.totalorder %s24, 0
      %p176 = por %p174, %p175
      %p177 = scmp.ne.s32.totalorder %s163, %s164
      %p178 = scmp.eq.s32.totalorder %s25, 1
      %p179 = por %p177, %p178
      %p181 = scmp.ne.s32.totalorder %s164, %s180
      %p182 = scmp.eq.s32.totalorder %s25, 0
      %p183 = por %p181, %p182
      %p184 = scmp.le.s32.totalorder 1, %s19
      %p185 = scmp.lt.s32.totalorder %s19, 3
      %p186 = pnand %p184, %p185
      %p187 = pneg %p186
      // Predicated region
      $region9: #{tpu_custom_call.1} parent=5 // pred_check
        _
      $region10: #{tpu_custom_call.1} parent=5 // pred_check_branch
        %189 = sbr.rel (%p186) target = $region12
      $region11: #{tpu_custom_call.1} parent=5 // pred_region
        %s190 = ssub.s32 %s19, 1
        // Predicated region
        $region13: #{tpu_custom_call.1} parent=11 // pred_check
          %p191 = pneg %p66
        $region14: #{tpu_custom_call.1} parent=11 // pred_check_branch
          %193 = sbr.rel (%p191) target = $region16
        $region15: #{tpu_custom_call.1} parent=11 // pred_region
          %s195 = ssub.s32 2048, 2048
          %196 = vsyncadd [#allocation6], %s195
          %s197 = sshll.u32 [#allocation5], 4
          %s198 = int_to_ptr.vmem [resolvable:$true] %s197
          %203 = dma.hbm_to_vmem [thread:$0]  %s1, 2048, %s198, [#allocation6], 128, 128, 8
        $region16: #{tpu_custom_call.1} parent=11 // pred_fallthru
          _
        // Predicated region
        $region17: #{tpu_custom_call.1} parent=11 // pred_check
          %p204 = pneg %p87
        $region18: #{tpu_custom_call.1} parent=11 // pred_check_branch
          %206 = sbr.rel (%p204) target = $region20
        $region19: #{tpu_custom_call.1} parent=11 // pred_region
          _
        $region20: #{tpu_custom_call.1} parent=11 // pred_fallthru
          _
        // Predicated region
        $region21: #{tpu_custom_call.1} parent=11 // pred_check
          %p207 = pneg %p108
        $region22: #{tpu_custom_call.1} parent=11 // pred_check_branch
          %209 = sbr.rel (%p207) target = $region24
        $region23: #{tpu_custom_call.1} parent=11 // pred_region
          %s211 = ssub.s32 2048, 2048
          %212 = vsyncadd [#allocation6], %s211
          %s213 = sshll.u32 [#allocation7], 4
          %s214 = int_to_ptr.vmem [resolvable:$true] %s213
          %219 = dma.hbm_to_vmem [thread:$0]  %s3, 2048, %s214, [#allocation6], 128, 128, 8
        $region24: #{tpu_custom_call.1} parent=11 // pred_fallthru
          _
        // Predicated region
        $region25: #{tpu_custom_call.1} parent=11 // pred_check
          %p220 = pneg %p129
        $region26: #{tpu_custom_call.1} parent=11 // pred_check_branch
          %222 = sbr.rel (%p220) target = $region28
        $region27: #{tpu_custom_call.1} parent=11 // pred_region
          _
        $region28: #{tpu_custom_call.1} parent=11 // pred_fallthru
          _
        // Predicated region
        $region29: #{tpu_custom_call.1} parent=11 // pred_check
          %p223 = pneg %p150
        $region30: #{tpu_custom_call.1} parent=11 // pred_check_branch
          %225 = sbr.rel (%p223) target = $region32
        $region31: #{tpu_custom_call.1} parent=11 // pred_region
          _
        $region32: #{tpu_custom_call.1} parent=11 // pred_fallthru
          _
      $region12: #{tpu_custom_call.1} parent=5 // pred_fallthru
        _
      %p226 = scmp.lt.s32.totalorder %s19, 2
      // Predicated region
      $region33: #{tpu_custom_call.1} parent=5 // pred_check
        %p227 = pneg %p226
      $region34: #{tpu_custom_call.1} parent=5 // pred_check_branch
        %229 = sbr.rel (%p227) target = $region36
      $region35: #{tpu_custom_call.1} parent=5 // pred_region
        // Predicated region
        $region37: #{tpu_custom_call.1} parent=35 // pred_check
          %p230 = pneg %p39
        $region38: #{tpu_custom_call.1} parent=35 // pred_check_branch
          %232 = sbr.rel (%p230) target = $region40
        $region39: #{tpu_custom_call.1} parent=35 // pred_region
          %s233 = sand.u32 %s29, 1
          %s234 = scalar_lea.sflag [#allocation3], %s233
          %s235 = sand.u32 %s29, 1
          %s236 = smul.addr %s235, 64
          %s237 = scalar_lea.vmem [#allocation2], %s236
          %s238 = smul.u32 8, %s19
          %s240 = ssub.s32 1024, 1024
          %241 = vsyncadd %s234, %s240
          %s242 = smul.addr %s238, 128
          %s243 = scalar_lea.hbm %s0, %s242
          %s244 = sshll.u32 %s237, 4
          %s245 = int_to_ptr.vmem [resolvable:$true] %s244
          %250 = dma.hbm_to_vmem [thread:$0]  %s243, 1024, %s245, %s234, 128, 128, 8
        $region40: #{tpu_custom_call.1} parent=35 // pred_fallthru
          _
      $region36: #{tpu_custom_call.1} parent=5 // pred_fallthru
        _
      %p251 = scmp.le.s32.totalorder 1, %s19
      %p252 = scmp.lt.s32.totalorder %s19, 3
      %p253 = pnand %p251, %p252
      %p254 = pneg %p253
      // Predicated region
      $region41: #{tpu_custom_call.1} parent=5 // pred_check
        _
      $region42: #{tpu_custom_call.1} parent=5 // pred_check_branch
        %256 = sbr.rel (%p253) target = $region44
      $region43: #{tpu_custom_call.1} parent=5 // pred_region
        %s257 = ssub.s32 %s19, 1
        %s258 = sand.u32 %s32, 1
        %s259 = scalar_lea.sflag [#allocation3], %s258
        %s260 = sand.u32 %s32, 1
        %s261 = smul.addr %s260, 64
        %s262 = scalar_lea.vmem [#allocation2], %s261
        // Predicated region
        $region45: #{tpu_custom_call.1} parent=43 // pred_check
          %p263 = pneg %p45
        $region46: #{tpu_custom_call.1} parent=43 // pred_check_branch
          %265 = sbr.rel (%p263) target = $region48
        $region47: #{tpu_custom_call.1} parent=43 // pred_region
          %266 = dma.done %s259, 1024
        $region48: #{tpu_custom_call.1} parent=43 // pred_fallthru
          _
        // Predicated region
        $region49: #{tpu_custom_call.1} parent=43 // pred_check
          %p267 = pneg %p66
        $region50: #{tpu_custom_call.1} parent=43 // pred_check_branch
          %269 = sbr.rel (%p267) target = $region52
        $region51: #{tpu_custom_call.1} parent=43 // pred_region
          %270 = dma.done [#allocation6], 2048
        $region52: #{tpu_custom_call.1} parent=43 // pred_fallthru
          _
        // Predicated region
        $region53: #{tpu_custom_call.1} parent=43 // pred_check
          %p271 = pneg %p108
        $region54: #{tpu_custom_call.1} parent=43 // pred_check_branch
          %273 = sbr.rel (%p271) target = $region56
        $region55: #{tpu_custom_call.1} parent=43 // pred_region
          %274 = dma.done [#allocation6], 2048
        $region56: #{tpu_custom_call.1} parent=43 // pred_fallthru
          _
        %s275 = sand.u32 %s32, 1
        %s276 = scalar_lea.sflag [#allocation3], %s275
        %s277 = sand.u32 %s32, 1
        %s278 = smul.addr %s277, 64
        %s279 = scalar_lea.vmem [#allocation2], %s278
        %p280 = pneg %p45
        %p281 = pneg %p42
        %p282 = pneg %p66
        %p283 = pneg %p63
        %p284 = pneg %p87
        %p285 = pneg %p84
        %p286 = pneg %p108
        %p287 = pneg %p105
        %p288 = pneg %p129
        %p289 = pneg %p126
        %p290 = pneg %p150
        %p291 = pneg %p147
        %p292 = pneg %p176
        %p293 = pneg %p173
        %s294 = sand.u32 %s163, 1
        %s295 = scalar_lea.sflag [#allocation4], %s294
        %s296 = sand.u32 %s163, 1
        %s297 = smul.addr %s296, 8
        %s298 = scalar_lea.vmem [#allocation8], %s297
        %s299 = smul.u32 8, %s24
        %v300 = vld [vmem:[%s262] sm:$0xff]
        %v301 = vld [vmem:[%s262 + $0x8] sm:$0xff]
        %v302 = vld [vmem:[%s262 + $0x10] sm:$0xff]
        %v303 = vld [vmem:[%s262 + $0x18] sm:$0xff]
        %v304 = vld [vmem:[%s262 + $0x20] sm:$0xff]
        %v305 = vld [vmem:[%s262 + $0x28] sm:$0xff]
        %v306 = vld [vmem:[%s262 + $0x30] sm:$0xff]
        %v307 = vld [vmem:[%s262 + $0x38] sm:$0xff]
        %v308 = vld [vmem:[#allocation5] sm:$0xff]
        %v309 = vld [vmem:[#allocation5 + $0x8] sm:$0xff]
        %v310 = vld [vmem:[#allocation5 + $0x10] sm:$0xff]
        %v311 = vld [vmem:[#allocation5 + $0x18] sm:$0xff]
        %v312 = vld [vmem:[#allocation5 + $0x20] sm:$0xff]
        %v313 = vld [vmem:[#allocation5 + $0x28] sm:$0xff]
        %v314 = vld [vmem:[#allocation5 + $0x30] sm:$0xff]
        %v315 = vld [vmem:[#allocation5 + $0x38] sm:$0xff]
        %v316 = vld [vmem:[#allocation5 + $0x40] sm:$0xff]
        %v317 = vld [vmem:[#allocation5 + $0x48] sm:$0xff]
        %v318 = vld [vmem:[#allocation5 + $0x50] sm:$0xff]
        %v319 = vld [vmem:[#allocation5 + $0x58] sm:$0xff]
        %v320 = vld [vmem:[#allocation5 + $0x60] sm:$0xff]
        %v321 = vld [vmem:[#allocation5 + $0x68] sm:$0xff]
        %v322 = vld [vmem:[#allocation5 + $0x70] sm:$0xff]
        %v323 = vld [vmem:[#allocation5 + $0x78] sm:$0xff]
        %v324 = vld [vmem:[%s2] sm:$0x1]
        %v326 = vlaneseq
        %v327 = vshrl.u32 %v326, 7
        %v328 = vsub.s32 0, %v327
        %v329 = vrot.slane %v324, %v328
        %331 = vmatprep.subr.mxu0 0.0
        %332 = vmatpush1.msra.mxu0 %v323
        %333 = vmatprep.subr.mxu0 0.0
        %334 = vmatpush1.msra.mxu0 %v322
        %335 = vmatprep.subr.mxu0 0.0
        %336 = vmatpush1.msra.mxu0 %v321
        %337 = vmatprep.subr.mxu0 0.0
        %338 = vmatpush1.msra.mxu0 %v320
        %339 = vmatprep.subr.mxu0 0.0
        %340 = vmatpush1.msra.mxu0 %v319
        %341 = vmatprep.subr.mxu0 0.0
        %342 = vmatpush1.msra.mxu0 %v318
        %343 = vmatprep.subr.mxu0 0.0
        %344 = vmatpush1.msra.mxu0 %v317
        %345 = vmatprep.subr.mxu0 0.0
        %346 = vmatpush1.msra.mxu0 %v316
        %347 = vmatprep.subr.mxu0 0.0
        %348 = vmatpush1.msra.mxu0 %v315
        %349 = vmatprep.subr.mxu0 0.0
        %350 = vmatpush1.msra.mxu0 %v314
        %351 = vmatprep.subr.mxu0 0.0
        %352 = vmatpush1.msra.mxu0 %v313
        %353 = vmatprep.subr.mxu0 0.0
        %354 = vmatpush1.msra.mxu0 %v312
        %355 = vmatprep.subr.mxu0 0.0
        %356 = vmatpush1.msra.mxu0 %v311
        %357 = vmatprep.subr.mxu0 0.0
        %358 = vmatpush1.msra.mxu0 %v310
        %359 = vmatprep.subr.mxu0 0.0
        %360 = vmatpush1.msra.mxu0 %v309
        %361 = vmatprep.subr.mxu0 0.0
        %362 = vmatpush1.msra.mxu0 %v308
        %363 = vmatprep.subr.mxu0 0.0
        %364 = vmatpush2.msra.mxu0 0.0
        %365 = vmatprep.subr.mxu0 0.0
        %366 = vmatpush2.msra.mxu0 0.0
        %367 = vmatprep.subr.mxu0 0.0
        %368 = vmatpush2.msra.mxu0 0.0
        %369 = vmatprep.subr.mxu0 0.0
        %370 = vmatpush2.msra.mxu0 0.0
        %371 = vmatprep.subr.mxu0 0.0
        %372 = vmatpush2.msra.mxu0 0.0
        %373 = vmatprep.subr.mxu0 0.0
        %374 = vmatpush2.msra.mxu0 0.0
        %375 = vmatprep.subr.mxu0 0.0
        %376 = vmatpush2.msra.mxu0 0.0
        %377 = vmatprep.subr.mxu0 0.0
        %378 = vmatpush2.msra.mxu0 0.0
        %379 = vmatprep.subr.mxu0 0.0
        %380 = vmatpush2.msra.mxu0 0.0
        %381 = vmatprep.subr.mxu0 0.0
        %382 = vmatpush2.msra.mxu0 0.0
        %383 = vmatprep.subr.mxu0 0.0
        %384 = vmatpush2.msra.mxu0 0.0
        %385 = vmatprep.subr.mxu0 0.0
        %386 = vmatpush2.msra.mxu0 0.0
        %387 = vmatprep.subr.mxu0 0.0
        %388 = vmatpush2.msra.mxu0 0.0
        %389 = vmatprep.subr.mxu0 0.0
        %390 = vmatpush2.msra.mxu0 0.0
        %391 = vmatprep.subr.mxu0 0.0
        %392 = vmatpush2.msra.mxu0 0.0
        %393 = vmatprep.subr.mxu0 0.0
        %394 = vmatpush2.msra.mxu0 0.0
        %395 = vmatprep.mubr.f32.mxu0 0.0
        %396 = vmatmul.mubr.f32.gmra.mxu0 %v300
        %v397 = vpop.f32.mrf.mxu0
        %v398 = vadd.f32 %v329, %v397
        %v399 = vpop.f32.mrf.mxu0
        %400 = vmatprep.mubr.f32.mxu0 0.0
        %401 = vmatmul.mubr.f32.gmra.mxu0 %v301
        %v402 = vpop.f32.mrf.mxu0
        %v403 = vadd.f32 %v329, %v402
        %v404 = vpop.f32.mrf.mxu0
        %405 = vmatprep.mubr.f32.mxu0 0.0
        %406 = vmatmul.mubr.f32.gmra.mxu0 %v302
        %v407 = vpop.f32.mrf.mxu0
        %v408 = vadd.f32 %v329, %v407
        %v409 = vpop.f32.mrf.mxu0
        %410 = vmatprep.mubr.f32.mxu0 0.0
        %411 = vmatmul.mubr.f32.gmra.mxu0 %v303
        %v412 = vpop.f32.mrf.mxu0
        %v413 = vadd.f32 %v329, %v412
        %v414 = vpop.f32.mrf.mxu0
        %415 = vmatprep.mubr.f32.mxu0 0.0
        %416 = vmatmul.mubr.f32.gmra.mxu0 %v304
        %v417 = vpop.f32.mrf.mxu0
        %v418 = vadd.f32 %v329, %v417
        %v419 = vpop.f32.mrf.mxu0
        %420 = vmatprep.mubr.f32.mxu0 0.0
        %421 = vmatmul.mubr.f32.gmra.mxu0 %v305
        %v422 = vpop.f32.mrf.mxu0
        %v423 = vadd.f32 %v329, %v422
        %v424 = vpop.f32.mrf.mxu0
        %425 = vmatprep.mubr.f32.mxu0 0.0
        %426 = vmatmul.mubr.f32.gmra.mxu0 %v306
        %v427 = vpop.f32.mrf.mxu0
        %v428 = vadd.f32 %v329, %v427
        %v429 = vpop.f32.mrf.mxu0
        %430 = vmatprep.mubr.f32.mxu0 0.0
        %431 = vmatmul.mubr.f32.gmra.mxu0 %v307
        %v432 = vpop.f32.mrf.mxu0
        %v433 = vadd.f32 %v329, %v432
        %v434 = vpop.f32.mrf.mxu0
        %435 = vdwg.mxu0
        %v436 = vmax.f32 %v398, 0.0
        %v437 = vmax.f32 %v403, 0.0
        %v438 = vmax.f32 %v408, 0.0
        %v439 = vmax.f32 %v413, 0.0
        %v440 = vmax.f32 %v418, 0.0
        %v441 = vmax.f32 %v423, 0.0
        %v442 = vmax.f32 %v428, 0.0
        %v443 = vmax.f32 %v433, 0.0
        %v444 = vld [vmem:[#allocation7] sm:$0xff]
        %v445 = vld [vmem:[#allocation7 + $0x8] sm:$0xff]
        %v446 = vld [vmem:[#allocation7 + $0x10] sm:$0xff]
        %v447 = vld [vmem:[#allocation7 + $0x18] sm:$0xff]
        %v448 = vld [vmem:[#allocation7 + $0x20] sm:$0xff]
        %v449 = vld [vmem:[#allocation7 + $0x28] sm:$0xff]
        %v450 = vld [vmem:[#allocation7 + $0x30] sm:$0xff]
        %v451 = vld [vmem:[#allocation7 + $0x38] sm:$0xff]
        %v452 = vld [vmem:[#allocation7 + $0x40] sm:$0xff]
        %v453 = vld [vmem:[#allocation7 + $0x48] sm:$0xff]
        %v454 = vld [vmem:[#allocation7 + $0x50] sm:$0xff]
        %v455 = vld [vmem:[#allocation7 + $0x58] sm:$0xff]
        %v456 = vld [vmem:[#allocation7 + $0x60] sm:$0xff]
        %v457 = vld [vmem:[#allocation7 + $0x68] sm:$0xff]
        %v458 = vld [vmem:[#allocation7 + $0x70] sm:$0xff]
        %v459 = vld [vmem:[#allocation7 + $0x78] sm:$0xff]
        %v460 = vld [vmem:[%s4] sm:$0x1]
        %v462 = vlaneseq
        %v463 = vshrl.u32 %v462, 7
        %v464 = vsub.s32 0, %v463
        %v465 = vrot.slane %v460, %v464
        %467 = vmatprep.subr.mxu0 0.0
        %468 = vmatpush1.msra.mxu0 %v459
        %469 = vmatprep.subr.mxu0 0.0
        %470 = vmatpush1.msra.mxu0 %v458
        %471 = vmatprep.subr.mxu0 0.0
        %472 = vmatpush1.msra.mxu0 %v457
        %473 = vmatprep.subr.mxu0 0.0
        %474 = vmatpush1.msra.mxu0 %v456
        %475 = vmatprep.subr.mxu0 0.0
        %476 = vmatpush1.msra.mxu0 %v455
        %477 = vmatprep.subr.mxu0 0.0
        %478 = vmatpush1.msra.mxu0 %v454
        %479 = vmatprep.subr.mxu0 0.0
        %480 = vmatpush1.msra.mxu0 %v453
        %481 = vmatprep.subr.mxu0 0.0
        %482 = vmatpush1.msra.mxu0 %v452
        %483 = vmatprep.subr.mxu0 0.0
        %484 = vmatpush1.msra.mxu0 %v451
        %485 = vmatprep.subr.mxu0 0.0
        %486 = vmatpush1.msra.mxu0 %v450
        %487 = vmatprep.subr.mxu0 0.0
        %488 = vmatpush1.msra.mxu0 %v449
        %489 = vmatprep.subr.mxu0 0.0
        %490 = vmatpush1.msra.mxu0 %v448
        %491 = vmatprep.subr.mxu0 0.0
        %492 = vmatpush1.msra.mxu0 %v447
        %493 = vmatprep.subr.mxu0 0.0
        %494 = vmatpush1.msra.mxu0 %v446
        %495 = vmatprep.subr.mxu0 0.0
        %496 = vmatpush1.msra.mxu0 %v445
        %497 = vmatprep.subr.mxu0 0.0
        %498 = vmatpush1.msra.mxu0 %v444
        %499 = vmatprep.subr.mxu0 0.0
        %500 = vmatpush2.msra.mxu0 0.0
        %501 = vmatprep.subr.mxu0 0.0
        %502 = vmatpush2.msra.mxu0 0.0
        %503 = vmatprep.subr.mxu0 0.0
        %504 = vmatpush2.msra.mxu0 0.0
        %505 = vmatprep.subr.mxu0 0.0
        %506 = vmatpush2.msra.mxu0 0.0
        %507 = vmatprep.subr.mxu0 0.0
        %508 = vmatpush2.msra.mxu0 0.0
        %509 = vmatprep.subr.mxu0 0.0
        %510 = vmatpush2.msra.mxu0 0.0
        %511 = vmatprep.subr.mxu0 0.0
        %512 = vmatpush2.msra.mxu0 0.0
        %513 = vmatprep.subr.mxu0 0.0
        %514 = vmatpush2.msra.mxu0 0.0
        %515 = vmatprep.subr.mxu0 0.0
        %516 = vmatpush2.msra.mxu0 0.0
        %517 = vmatprep.subr.mxu0 0.0
        %518 = vmatpush2.msra.mxu0 0.0
        %519 = vmatprep.subr.mxu0 0.0
        %520 = vmatpush2.msra.mxu0 0.0
        %521 = vmatprep.subr.mxu0 0.0
        %522 = vmatpush2.msra.mxu0 0.0
        %523 = vmatprep.subr.mxu0 0.0
        %524 = vmatpush2.msra.mxu0 0.0
        %525 = vmatprep.subr.mxu0 0.0
        %526 = vmatpush2.msra.mxu0 0.0
        %527 = vmatprep.subr.mxu0 0.0
        %528 = vmatpush2.msra.mxu0 0.0
        %529 = vmatprep.subr.mxu0 0.0
        %530 = vmatpush2.msra.mxu0 0.0
        %531 = vmatprep.mubr.f32.mxu0 0.0
        %532 = vmatmul.mubr.f32.gmra.mxu0 %v436
        %v533 = vpop.f32.mrf.mxu0
        %v534 = vadd.f32 %v465, %v533
        %v535 = vpop.f32.mrf.mxu0
        %536 = vmatprep.mubr.f32.mxu0 0.0
        %537 = vmatmul.mubr.f32.gmra.mxu0 %v437
        %v538 = vpop.f32.mrf.mxu0
        %v539 = vadd.f32 %v465, %v538
        %v540 = vpop.f32.mrf.mxu0
        %541 = vmatprep.mubr.f32.mxu0 0.0
        %542 = vmatmul.mubr.f32.gmra.mxu0 %v438
        %v543 = vpop.f32.mrf.mxu0
        %v544 = vadd.f32 %v465, %v543
        %v545 = vpop.f32.mrf.mxu0
        %546 = vmatprep.mubr.f32.mxu0 0.0
        %547 = vmatmul.mubr.f32.gmra.mxu0 %v439
        %v548 = vpop.f32.mrf.mxu0
        %v549 = vadd.f32 %v465, %v548
        %v550 = vpop.f32.mrf.mxu0
        %551 = vmatprep.mubr.f32.mxu0 0.0
        %552 = vmatmul.mubr.f32.gmra.mxu0 %v440
        %v553 = vpop.f32.mrf.mxu0
        %v554 = vadd.f32 %v465, %v553
        %v555 = vpop.f32.mrf.mxu0
        %556 = vmatprep.mubr.f32.mxu0 0.0
        %557 = vmatmul.mubr.f32.gmra.mxu0 %v441
        %v558 = vpop.f32.mrf.mxu0
        %v559 = vadd.f32 %v465, %v558
        %v560 = vpop.f32.mrf.mxu0
        %561 = vmatprep.mubr.f32.mxu0 0.0
        %562 = vmatmul.mubr.f32.gmra.mxu0 %v442
        %v563 = vpop.f32.mrf.mxu0
        %v564 = vadd.f32 %v465, %v563
        %v565 = vpop.f32.mrf.mxu0
        %566 = vmatprep.mubr.f32.mxu0 0.0
        %567 = vmatmul.mubr.f32.gmra.mxu0 %v443
        %v568 = vpop.f32.mrf.mxu0
        %v569 = vadd.f32 %v465, %v568
        %v570 = vpop.f32.mrf.mxu0
        %571 = vdwg.mxu0
        %v572 = vtanh.pop %v534
        %v573 = vtanh.pop %v539
        %v574 = vtanh.pop %v544
        %v575 = vtanh.pop %v549
        %v576 = vtanh.pop %v554
        %v577 = vtanh.pop %v559
        %v578 = vtanh.pop %v564
        %v579 = vtanh.pop %v569
        %v580 = vld [vmem:[%s5] sm:$0x1]
        %v582 = vlaneseq
        %v583 = vshrl.u32 %v582, 7
        %v584 = vsub.s32 0, %v583
        %v585 = vrot.slane %v580, %v584
        %v587 = vmul.f32 %v572, %v585
        %v588 = vmul.f32 %v573, %v585
        %v589 = vmul.f32 %v574, %v585
        %v590 = vmul.f32 %v575, %v585
        %v591 = vmul.f32 %v576, %v585
        %v592 = vmul.f32 %v577, %v585
        %v593 = vmul.f32 %v578, %v585
        %v594 = vmul.f32 %v579, %v585
        %595 = vadd.xlane.f32.xlu0 %v587
        %v596 = vpop.xlane.xlu0 %595
        %597 = vadd.xlane.f32.xlu0 %v588
        %v598 = vpop.xlane.xlu0 %597
        %599 = vadd.xlane.f32.xlu0 %v589
        %v600 = vpop.xlane.xlu0 %599
        %601 = vadd.xlane.f32.xlu0 %v590
        %v602 = vpop.xlane.xlu0 %601
        %603 = vadd.xlane.f32.xlu0 %v591
        %v604 = vpop.xlane.xlu0 %603
        %605 = vadd.xlane.f32.xlu0 %v592
        %v606 = vpop.xlane.xlu0 %605
        %607 = vadd.xlane.f32.xlu0 %v593
        %v608 = vpop.xlane.xlu0 %607
        %609 = vadd.xlane.f32.xlu0 %v594
        %v610 = vpop.xlane.xlu0 %609
        %v611 = vrot.slane %v596, 4
        %v612 = vmax.f32 %v596, %v611
        %v613 = vrot.slane %v612, 2
        %v614 = vmax.f32 %v612, %v613
        %v615 = vrot.slane %v614, 1
        %v616 = vmax.f32 %v614, %v615
        %v617 = vrot.slane %v598, 4
        %v618 = vmax.f32 %v598, %v617
        %v619 = vrot.slane %v618, 2
        %v620 = vmax.f32 %v618, %v619
        %v621 = vrot.slane %v620, 1
        %v622 = vmax.f32 %v620, %v621
        %v623 = vrot.slane %v600, 4
        %v624 = vmax.f32 %v600, %v623
        %v625 = vrot.slane %v624, 2
        %v626 = vmax.f32 %v624, %v625
        %v627 = vrot.slane %v626, 1
        %v628 = vmax.f32 %v626, %v627
        %v629 = vrot.slane %v602, 4
        %v630 = vmax.f32 %v602, %v629
        %v631 = vrot.slane %v630, 2
        %v632 = vmax.f32 %v630, %v631
        %v633 = vrot.slane %v632, 1
        %v634 = vmax.f32 %v632, %v633
        %v635 = vrot.slane %v604, 4
        %v636 = vmax.f32 %v604, %v635
        %v637 = vrot.slane %v636, 2
        %v638 = vmax.f32 %v636, %v637
        %v639 = vrot.slane %v638, 1
        %v640 = vmax.f32 %v638, %v639
        %v641 = vrot.slane %v606, 4
        %v642 = vmax.f32 %v606, %v641
        %v643 = vrot.slane %v642, 2
        %v644 = vmax.f32 %v642, %v643
        %v645 = vrot.slane %v644, 1
        %v646 = vmax.f32 %v644, %v645
        %v647 = vrot.slane %v608, 4
        %v648 = vmax.f32 %v608, %v647
        %v649 = vrot.slane %v648, 2
        %v650 = vmax.f32 %v648, %v649
        %v651 = vrot.slane %v650, 1
        %v652 = vmax.f32 %v650, %v651
        %v653 = vrot.slane %v610, 4
        %v654 = vmax.f32 %v610, %v653
        %v655 = vrot.slane %v654, 2
        %v656 = vmax.f32 %v654, %v655
        %v657 = vrot.slane %v656, 1
        %v658 = vmax.f32 %v656, %v657
        %v659 = vsub.f32 %v596, %v616
        %v660 = vsub.f32 %v598, %v622
        %v661 = vsub.f32 %v600, %v628
        %v662 = vsub.f32 %v602, %v634
        %v663 = vsub.f32 %v604, %v640
        %v664 = vsub.f32 %v606, %v646
        %v665 = vsub.f32 %v608, %v652
        %v666 = vsub.f32 %v610, %v658
        %v667 = vmul.f32 %v659, 1.442695
        %v668 = vpow.pop %v667
        %v669 = vmul.f32 %v660, 1.442695
        %v670 = vpow.pop %v669
        %v671 = vmul.f32 %v661, 1.442695
        %v672 = vpow.pop %v671
        %v673 = vmul.f32 %v662, 1.442695
        %v674 = vpow.pop %v673
        %v675 = vmul.f32 %v663, 1.442695
        %v676 = vpow.pop %v675
        %v677 = vmul.f32 %v664, 1.442695
        %v678 = vpow.pop %v677
        %v679 = vmul.f32 %v665, 1.442695
        %v680 = vpow.pop %v679
        %v681 = vmul.f32 %v666, 1.442695
        %v682 = vpow.pop %v681
        %v683 = vrot.slane %v668, 4
        %v684 = vadd.f32 %v668, %v683
        %v685 = vrot.slane %v684, 2
        %v686 = vadd.f32 %v684, %v685
        %v687 = vrot.slane %v686, 1
        %v688 = vadd.f32 %v686, %v687
        %v689 = vrot.slane %v670, 4
        %v690 = vadd.f32 %v670, %v689
        %v691 = vrot.slane %v690, 2
        %v692 = vadd.f32 %v690, %v691
        %v693 = vrot.slane %v692, 1
        %v694 = vadd.f32 %v692, %v693
        %v695 = vrot.slane %v672, 4
        %v696 = vadd.f32 %v672, %v695
        %v697 = vrot.slane %v696, 2
        %v698 = vadd.f32 %v696, %v697
        %v699 = vrot.slane %v698, 1
        %v700 = vadd.f32 %v698, %v699
        %v701 = vrot.slane %v674, 4
        %v702 = vadd.f32 %v674, %v701
        %v703 = vrot.slane %v702, 2
        %v704 = vadd.f32 %v702, %v703
        %v705 = vrot.slane %v704, 1
        %v706 = vadd.f32 %v704, %v705
        %v707 = vrot.slane %v676, 4
        %v708 = vadd.f32 %v676, %v707
        %v709 = vrot.slane %v708, 2
        %v710 = vadd.f32 %v708, %v709
        %v711 = vrot.slane %v710, 1
        %v712 = vadd.f32 %v710, %v711
        %v713 = vrot.slane %v678, 4
        %v714 = vadd.f32 %v678, %v713
        %v715 = vrot.slane %v714, 2
        %v716 = vadd.f32 %v714, %v715
        %v717 = vrot.slane %v716, 1
        %v718 = vadd.f32 %v716, %v717
        %v719 = vrot.slane %v680, 4
        %v720 = vadd.f32 %v680, %v719
        %v721 = vrot.slane %v720, 2
        %v722 = vadd.f32 %v720, %v721
        %v723 = vrot.slane %v722, 1
        %v724 = vadd.f32 %v722, %v723
        %v725 = vrot.slane %v682, 4
        %v726 = vadd.f32 %v682, %v725
        %v727 = vrot.slane %v726, 2
        %v728 = vadd.f32 %v726, %v727
        %v729 = vrot.slane %v728, 1
        %v730 = vadd.f32 %v728, %v729
        %v731 = vrcp.pop %v688
        %v732 = vrcp.pop %v694
        %v733 = vrcp.pop %v700
        %v734 = vrcp.pop %v706
        %v735 = vrcp.pop %v712
        %v736 = vrcp.pop %v718
        %v737 = vrcp.pop %v724
        %v738 = vrcp.pop %v730
        %v739 = vmul.f32 %v668, %v731
        %v740 = vmul.f32 %v670, %v732
        %v741 = vmul.f32 %v672, %v733
        %v742 = vmul.f32 %v674, %v734
        %v743 = vmul.f32 %v676, %v735
        %v744 = vmul.f32 %v678, %v736
        %v745 = vmul.f32 %v680, %v737
        %v746 = vmul.f32 %v682, %v738
        %v747 = vmul.f32 %v436, %v739
        %v748 = vmul.f32 %v437, %v740
        %v749 = vmul.f32 %v438, %v741
        %v750 = vmul.f32 %v439, %v742
        %v751 = vmul.f32 %v440, %v743
        %v752 = vmul.f32 %v441, %v744
        %v753 = vmul.f32 %v442, %v745
        %v754 = vmul.f32 %v443, %v746
        %v755 = vrot.slane %v747, 4
        %v756 = vadd.f32 %v747, %v755
        %v757 = vrot.slane %v756, 2
        %v758 = vadd.f32 %v756, %v757
        %v759 = vrot.slane %v758, 1
        %v760 = vadd.f32 %v758, %v759
        %v761 = vrot.slane %v748, 4
        %v762 = vadd.f32 %v748, %v761
        %v763 = vrot.slane %v762, 2
        %v764 = vadd.f32 %v762, %v763
        %v765 = vrot.slane %v764, 1
        %v766 = vadd.f32 %v764, %v765
        %v767 = vrot.slane %v749, 4
        %v768 = vadd.f32 %v749, %v767
        %v769 = vrot.slane %v768, 2
        %v770 = vadd.f32 %v768, %v769
        %v771 = vrot.slane %v770, 1
        %v772 = vadd.f32 %v770, %v771
        %v773 = vrot.slane %v750, 4
        %v774 = vadd.f32 %v750, %v773
        %v775 = vrot.slane %v774, 2
        %v776 = vadd.f32 %v774, %v775
        %v777 = vrot.slane %v776, 1
        %v778 = vadd.f32 %v776, %v777
        %v779 = vrot.slane %v751, 4
        %v780 = vadd.f32 %v751, %v779
        %v781 = vrot.slane %v780, 2
        %v782 = vadd.f32 %v780, %v781
        %v783 = vrot.slane %v782, 1
        %v784 = vadd.f32 %v782, %v783
        %v785 = vrot.slane %v752, 4
        %v786 = vadd.f32 %v752, %v785
        %v787 = vrot.slane %v786, 2
        %v788 = vadd.f32 %v786, %v787
        %v789 = vrot.slane %v788, 1
        %v790 = vadd.f32 %v788, %v789
        %v791 = vrot.slane %v753, 4
        %v792 = vadd.f32 %v753, %v791
        %v793 = vrot.slane %v792, 2
        %v794 = vadd.f32 %v792, %v793
        %v795 = vrot.slane %v794, 1
        %v796 = vadd.f32 %v794, %v795
        %v797 = vrot.slane %v754, 4
        %v798 = vadd.f32 %v754, %v797
        %v799 = vrot.slane %v798, 2
        %v800 = vadd.f32 %v798, %v799
        %v801 = vrot.slane %v800, 1
        %v802 = vadd.f32 %v800, %v801
        %vm811 = vcmask 1041409
        %v812 = vsel %vm811, %v766, %v760
        %vm813 = vcmask 1042434
        %v814 = vsel %vm813, %v772, %v812
        %vm815 = vcmask 1043459
        %v816 = vsel %vm815, %v778, %v814
        %vm817 = vcmask 1044484
        %v818 = vsel %vm817, %v784, %v816
        %vm819 = vcmask 1045509
        %v820 = vsel %vm819, %v790, %v818
        %vm821 = vcmask 1046534
        %v822 = vsel %vm821, %v796, %v820
        %vm823 = vcmask 1047559
        %v824 = vsel %vm823, %v802, %v822
        %826 = vst [vmem:[%s298] sm:$0xff] %v824
        %s827 = sand.u32 %s163, 1
        %s828 = scalar_lea.sflag [#allocation4], %s827
        %s829 = sand.u32 %s163, 1
        %s830 = smul.addr %s829, 8
        %s831 = scalar_lea.vmem [#allocation8], %s830
        // Predicated region
        $region57: #{tpu_custom_call.1} parent=43 // pred_check
          %p832 = pneg %p173
        $region58: #{tpu_custom_call.1} parent=43 // pred_check_branch
          %834 = sbr.rel (%p832) target = $region60
        $region59: #{tpu_custom_call.1} parent=43 // pred_region
          %s836 = ssub.s32 128, 128
          %837 = vsyncadd %s828, %s836
          %s838 = smul.addr %s24, 128
          %s839 = scalar_lea.hbm %s6, %s838
          %s841 = sshll.u32 %s831, 4
          %s842 = int_to_ptr.vmem [resolvable:$true] %s841
          %844 = dma.vmem_to_hbm [thread:$0]  %s842, 128, %s839, %s828
        $region60: #{tpu_custom_call.1} parent=43 // pred_fallthru
          _
      $region44: #{tpu_custom_call.1} parent=5 // pred_fallthru
        _
      %p845 = scmp.le.s32.totalorder 2, %s19
      // Predicated region
      $region61: #{tpu_custom_call.1} parent=5 // pred_check
        %p846 = pneg %p845
      $region62: #{tpu_custom_call.1} parent=5 // pred_check_branch
        %848 = sbr.rel (%p846) target = $region64
      $region63: #{tpu_custom_call.1} parent=5 // pred_region
        %s849 = ssub.s32 %s19, 2
        // Predicated region
        $region65: #{tpu_custom_call.1} parent=63 // pred_check
          %p850 = pneg %p179
        $region66: #{tpu_custom_call.1} parent=63 // pred_check_branch
          %852 = sbr.rel (%p850) target = $region68
        $region67: #{tpu_custom_call.1} parent=63 // pred_region
          %s853 = sand.u32 %s164, 1
          %s854 = scalar_lea.sflag [#allocation4], %s853
          %s855 = sand.u32 %s164, 1
          %s856 = smul.addr %s855, 8
          %s857 = scalar_lea.vmem [#allocation8], %s856
          %858 = dma.done %s854, 128
        $region68: #{tpu_custom_call.1} parent=63 // pred_fallthru
          _
      $region64: #{tpu_custom_call.1} parent=5 // pred_fallthru
        _
    $region6: #{tpu_custom_call.1} parent=1 // loop_footer
      %s23 = sadd.s32 1, %s19
    $region7: #{tpu_custom_call.1} parent=1 // loop_footer_branch
      %18 = sbr.rel target = $region3
    $region8: #{tpu_custom_call.1} parent=1 // loop_exit
      _
    %859 = vsyncpa [#allocation3], 1
    %s860 = scalar_lea.sflag [#allocation3], 1
    %861 = vsyncpa %s860, 1
    %862 = vsyncpa [#allocation6], 1
    %863 = vsyncpa [#allocation4], 1
    %s864 = scalar_lea.sflag [#allocation4], 1
    %865 = vsyncpa %s864, 1

</llo_original>
